<compile_context>
chip_gen: v6e
topology: v6e:2x2x1
jax: 0.10.0
libtpu: 0.0.40
codegen_flags: <defaults>
</compile_context>

<pallas_src>
import functools

import jax
import jax.numpy as jnp
from jax.experimental import pallas as pl
from jax.experimental.pallas import tpu as pltpu

_LANES = 128
_SUBLANE_PAD = 32  # int8-safe sublane multiple


def _round_up(x, m):
    return ((x + m - 1) // m) * m


def _entailment_loss_kernel(logits_ref, labels_ref, psum_ref, pred_ref, *,
                            tile_r, n_total, padded):
    """Per-tile body.

    logits_ref: (3, tile_r, 128) native float dtype (class-major, lane-dense)
    labels_ref: (tile_r, 128) int8, values in {-1, 0, 1}
    psum_ref:   (1, 8, 128) float32 per-tile partial sum of per-row NLL
    pred_ref:   (tile_r, 128) int8 predictions in {-1, 0, 1}
    """
    i = pl.program_id(0)

    # Upcast + clamp in-kernel (HBM traffic stays at native dtype).
    l0 = jnp.clip(logits_ref[0].astype(jnp.float32), -100.0, 100.0)
    l1 = jnp.clip(logits_ref[1].astype(jnp.float32), -100.0, 100.0)
    l2 = jnp.clip(logits_ref[2].astype(jnp.float32), -100.0, 100.0)

    # --- per-row cross entropy, fully elementwise across the 3 classes ---
    m = jnp.maximum(jnp.maximum(l0, l1), l2)                       # (tile_r, 128)
    se = jnp.exp(l0 - m) + jnp.exp(l1 - m) + jnp.exp(l2 - m)       # EUP exps
    lse = m + jnp.log(se)

    lab = labels_ref[...].astype(jnp.int32) + 1                    # class idx {0,1,2}
    picked = jnp.where(lab == 0, l0, jnp.where(lab == 1, l1, l2))
    nll = lse - picked                                             # (tile_r, 128)

    # Mask out padded rows (static check: only emitted when padding exists).
    if padded:
        rows = jax.lax.broadcasted_iota(jnp.int32, (tile_r, _LANES), 0)
        lanes = jax.lax.broadcasted_iota(jnp.int32, (tile_r, _LANES), 1)
        gidx = (i * tile_r + rows) * _LANES + lanes
        nll = jnp.where(gidx < n_total, nll, jnp.float32(0.0))

    # Per-tile partial sum kept lane-dense: reduce sublane-groups of 8 via vreg adds
    # (no cross-lane XLU reduce, no vector->SMEM round trip).
    part = jnp.sum(nll.reshape(tile_r // 8, 8, _LANES), axis=0)    # (8, 128)
    psum_ref[...] = part.reshape(1, 8, _LANES)

    # --- predictions: argmax over 3 classes, first occurrence on ties, minus 1 ---
    idx = jnp.where(l0 == m, 0, jnp.where(l1 == m, 1, 2))
    pred_ref[...] = (idx - 1).astype(jnp.int8)


def entailment_loss(logits, labels, *, max_rows_per_tile=1024):
    """JAX/Pallas equivalent of EntailmentLoss.forward.

    Args:
      logits: [B, 3] class logits (any float dtype; upcast to f32 in-kernel).
      labels: [B] class labels in {-1, 0, 1}.
      max_rows_per_tile: max sublane-rows (of 128 lanes each) per grid step;
        must be a multiple of 32.  1024 rows == 131072 batch rows per tile.

    Returns:
      (clipped_loss scalar, predictions [B] int32 in {-1, 0, 1}, metrics dict)
    """
    B, C = logits.shape
    if C != 3:
        raise ValueError("EntailmentLoss expects 3 classes")
    if max_rows_per_tile % _SUBLANE_PAD != 0:
        raise ValueError("max_rows_per_tile must be a multiple of 32")

    # Lane-dense layout: rows of 128 batch elements.
    rows = pl.cdiv(B, _LANES)
    rows_pad = _round_up(rows, _SUBLANE_PAD)
    tile_r = rows_pad if rows_pad <= max_rows_per_tile else max_rows_per_tile
    rows_p = _round_up(rows, tile_r)
    b_pad = rows_p * _LANES
    num_tiles = rows_p // tile_r
    padded = b_pad != B

    # Class-major, lane-dense re-layout (pure layout plumbing in the wrapper).
    logits_cm = jnp.pad(logits.T, ((0, 0), (0, b_pad - B))).reshape(C, rows_p, _LANES)
    labels_p = jnp.pad(labels.astype(jnp.int8), (0, b_pad - B)).reshape(rows_p, _LANES)

    kernel = functools.partial(_entailment_loss_kernel,
                               tile_r=tile_r, n_total=B, padded=padded)

    bytes_accessed = (logits_cm.size * logits_cm.dtype.itemsize   # logits in
                      + labels_p.size                             # int8 labels in
                      + rows_p * _LANES                           # int8 preds out
                      + num_tiles * 8 * _LANES * 4)               # f32 partial sums out
    cost = pl.CostEstimate(flops=25 * b_pad,
                           transcendentals=4 * b_pad,
                           bytes_accessed=bytes_accessed)

    psum, preds_p = pl.pallas_call(
        kernel,
        grid=(num_tiles,),
        in_specs=[
            pl.BlockSpec((C, tile_r, _LANES), lambda i: (0, i, 0)),
            pl.BlockSpec((tile_r, _LANES), lambda i: (i, 0)),
        ],
        out_specs=(
            pl.BlockSpec((1, 8, _LANES), lambda i: (i, 0, 0)),
            pl.BlockSpec((tile_r, _LANES), lambda i: (i, 0)),
        ),
        out_shape=(
            jax.ShapeDtypeStruct((num_tiles, 8, _LANES), jnp.float32),
            jax.ShapeDtypeStruct((rows_p, _LANES), jnp.int8),
        ),
        compiler_params=pltpu.CompilerParams(
            # No cross-iteration state -> batch axis is truly parallel
            # (shards across v7x's two TensorCores).
            dimension_semantics=("parallel",),
        ),
        cost_estimate=cost,
    )(logits_cm, labels_p)

    # Finalize in the wrapper: mean over the real batch, then clip (as in PyTorch).
    loss = jnp.clip(jnp.sum(psum) / jnp.float32(B), -10.0, 10.0)
    preds = preds_p.reshape(b_pad)[:B].astype(jnp.int32)

    # TODO(synk): TreeMatchingMetrics.compute_task_metrics not provided; metrics omitted.
    metrics = {}
    return loss, preds, metrics


def _reference(logits, labels):
    """Pure-JAX reference mirroring the PyTorch forward for a correctness check."""
    logits = jnp.clip(logits.astype(jnp.float32), -100.0, 100.0)
    idx = (labels + 1).astype(jnp.int32)
    logp = jax.nn.log_softmax(logits, axis=-1)
    nll = -jnp.take_along_axis(logp, idx[:, None], axis=1)[:, 0]
    loss = jnp.clip(jnp.mean(nll), -10.0, 10.0)
    preds = jnp.argmax(logits, axis=1) - 1
    return loss, preds


if __name__ == "__main__":
    key = jax.random.PRNGKey(0)

    # --- test 1: small batch, single tile, heavy lane padding path ---
    kx, kl = jax.random.split(key)
    B1 = 16
    logits1 = jax.random.normal(kx, (B1, 3), dtype=jnp.float32) * 3.0
    labels1 = jax.random.randint(kl, (B1,), -1, 2, dtype=jnp.int32)

    loss1, preds1, _ = entailment_loss(logits1, labels1)
    jax.block_until_ready((loss1, preds1))
    ref_loss1, ref_preds1 = _reference(logits1, labels1)
    assert jnp.allclose(loss1, ref_loss1, atol=1e-5), (loss1, ref_loss1)
    assert jnp.array_equal(preds1, ref_preds1), (preds1, ref_preds1)

    # --- test 2: multi-tile grid (small max_rows_per_tile to exercise the pipeline) ---
    kx2, kl2 = jax.random.split(jax.random.PRNGKey(0), 2)
    B2 = 5000
    logits2 = jax.random.normal(kx2, (B2, 3), dtype=jnp.float32) * 2.0
    labels2 = jax.random.randint(kl2, (B2,), -1, 2, dtype=jnp.int32)

    loss2, preds2, _ = entailment_loss(logits2, labels2, max_rows_per_tile=32)
    jax.block_until_ready((loss2, preds2))
    ref_loss2, ref_preds2 = _reference(logits2, labels2)
    assert jnp.allclose(loss2, ref_loss2, atol=1e-5), (loss2, ref_loss2)
    assert jnp.array_equal(preds2, ref_preds2), (preds2, ref_preds2)

    print("KERNEL_OK")
</pallas_src>

<mosaic_0001>
module attributes {stable_mosaic.version = 11 : i64} {
  func.func @_entailment_loss_kernel(%arg0: i32, %arg1: memref<3x32x128xf32, #tpu.memory_space<vmem>>, %arg2: memref<32x128xi8, #tpu.memory_space<vmem>>, %arg3: memref<1x8x128xf32, #tpu.memory_space<vmem>>, %arg4: memref<32x128xi8, #tpu.memory_space<vmem>>) attributes {dimension_semantics = [#tpu.dimension_semantics<parallel>], iteration_bounds = array<i64: 1>, scalar_prefetch = 0 : i64, scratch_operands = 0 : i64, tpu.core_type = #tpu.core_type<tc>, window_params = [{transform_indices = @transform_0, window_bounds = array<i64: 3, 32, 128>}, {transform_indices = @transform_1, window_bounds = array<i64: 32, 128>}, {transform_indices = @transform_2, window_bounds = array<i64: 1, 8, 128>}, {transform_indices = @transform_3, window_bounds = array<i64: 32, 128>}]} {
    %c0 = arith.constant 0 : index
    %c0_0 = arith.constant 0 : index
    %c0_1 = arith.constant 0 : index
    %0 = vector.load %arg1[%c0, %c0_0, %c0_1] : memref<3x32x128xf32, #tpu.memory_space<vmem>>, vector<1x32x128xf32>
    %1 = vector.shape_cast %0 : vector<1x32x128xf32> to vector<32x128xf32>
    %cst = arith.constant -1.000000e+02 : f32
    %cst_2 = arith.constant 1.000000e+02 : f32
    %2 = vector.broadcast %cst : f32 to vector<32x128xf32>
    %3 = arith.maximumf %2, %1 : vector<32x128xf32>
    %4 = vector.broadcast %cst_2 : f32 to vector<32x128xf32>
    %5 = arith.minimumf %4, %3 : vector<32x128xf32>
    %c1 = arith.constant 1 : index
    %c0_3 = arith.constant 0 : index
    %c0_4 = arith.constant 0 : index
    %6 = vector.load %arg1[%c1, %c0_3, %c0_4] : memref<3x32x128xf32, #tpu.memory_space<vmem>>, vector<1x32x128xf32>
    %7 = vector.shape_cast %6 : vector<1x32x128xf32> to vector<32x128xf32>
    %cst_5 = arith.constant -1.000000e+02 : f32
    %cst_6 = arith.constant 1.000000e+02 : f32
    %8 = vector.broadcast %cst_5 : f32 to vector<32x128xf32>
    %9 = arith.maximumf %8, %7 : vector<32x128xf32>
    %10 = vector.broadcast %cst_6 : f32 to vector<32x128xf32>
    %11 = arith.minimumf %10, %9 : vector<32x128xf32>
    %c2 = arith.constant 2 : index
    %c0_7 = arith.constant 0 : index
    %c0_8 = arith.constant 0 : index
    %12 = vector.load %arg1[%c2, %c0_7, %c0_8] : memref<3x32x128xf32, #tpu.memory_space<vmem>>, vector<1x32x128xf32>
    %13 = vector.shape_cast %12 : vector<1x32x128xf32> to vector<32x128xf32>
    %cst_9 = arith.constant -1.000000e+02 : f32
    %cst_10 = arith.constant 1.000000e+02 : f32
    %14 = vector.broadcast %cst_9 : f32 to vector<32x128xf32>
    %15 = arith.maximumf %14, %13 : vector<32x128xf32>
    %16 = vector.broadcast %cst_10 : f32 to vector<32x128xf32>
    %17 = arith.minimumf %16, %15 : vector<32x128xf32>
    %18 = arith.maximumf %5, %11 : vector<32x128xf32>
    %19 = arith.maximumf %18, %17 : vector<32x128xf32>
    %20 = arith.subf %5, %19 : vector<32x128xf32>
    %21 = math.exp %20 : vector<32x128xf32>
    %22 = arith.subf %11, %19 : vector<32x128xf32>
    %23 = math.exp %22 : vector<32x128xf32>
    %24 = arith.addf %21, %23 : vector<32x128xf32>
    %25 = arith.subf %17, %19 : vector<32x128xf32>
    %26 = math.exp %25 : vector<32x128xf32>
    %27 = arith.addf %24, %26 : vector<32x128xf32>
    %28 = math.log %27 : vector<32x128xf32>
    %29 = arith.addf %19, %28 : vector<32x128xf32>
    %c0_11 = arith.constant 0 : index
    %c0_12 = arith.constant 0 : index
    %30 = vector.load %arg2[%c0_11, %c0_12] : memref<32x128xi8, #tpu.memory_space<vmem>>, vector<32x128xi8>
    %31 = arith.extsi %30 : vector<32x128xi8> to vector<32x128xi32>
    %c1_i32 = arith.constant 1 : i32
    %32 = vector.broadcast %c1_i32 : i32 to vector<32x128xi32>
    %33 = arith.addi %31, %32 : vector<32x128xi32>
    %c0_i32 = arith.constant 0 : i32
    %34 = vector.broadcast %c0_i32 : i32 to vector<32x128xi32>
    %35 = arith.cmpi eq, %33, %34 : vector<32x128xi32>
    %c1_i32_13 = arith.constant 1 : i32
    %36 = vector.broadcast %c1_i32_13 : i32 to vector<32x128xi32>
    %37 = arith.cmpi eq, %33, %36 : vector<32x128xi32>
    %38 = arith.select %37, %11, %17 : vector<32x128xi1>, vector<32x128xf32>
    %39 = arith.select %35, %5, %38 : vector<32x128xi1>, vector<32x128xf32>
    %40 = arith.subf %29, %39 : vector<32x128xf32>
    %41 = tpu.iota {dimensions = array<i32: 0>} : vector<32x128xi32>
    %42 = tpu.iota {dimensions = array<i32: 1>} : vector<32x128xi32>
    %c32_i32 = arith.constant 32 : i32
    %43 = arith.muli %arg0, %c32_i32 : i32
    %44 = vector.broadcast %43 : i32 to vector<32x128xi32>
    %45 = arith.addi %44, %41 : vector<32x128xi32>
    %c128_i32 = arith.constant 128 : i32
    %46 = vector.broadcast %c128_i32 : i32 to vector<32x128xi32>
    %47 = arith.muli %45, %46 : vector<32x128xi32>
    %48 = arith.addi %47, %42 : vector<32x128xi32>
    %c16_i32 = arith.constant 16 : i32
    %49 = vector.broadcast %c16_i32 : i32 to vector<32x128xi32>
    %50 = arith.cmpi slt, %48, %49 : vector<32x128xi32>
    %cst_14 = arith.constant 0.000000e+00 : f32
    %51 = vector.broadcast %cst_14 : f32 to vector<32x128xf32>
    %52 = arith.select %50, %40, %51 : vector<32x128xi1>, vector<32x128xf32>
    %53 = vector.shape_cast %52 : vector<32x128xf32> to vector<4x8x128xf32>
    %cst_15 = arith.constant dense<0.000000e+00> : vector<8x128xf32>
    %54 = vector.multi_reduction <add>, %53, %cst_15 [0] : vector<4x8x128xf32> to vector<8x128xf32>
    %55 = vector.shape_cast %54 : vector<8x128xf32> to vector<1x8x128xf32>
    %c0_16 = arith.constant 0 : index
    %c0_17 = arith.constant 0 : index
    %c0_18 = arith.constant 0 : index
    %56 = vector.load %arg3[%c0_16, %c0_17, %c0_18] : memref<1x8x128xf32, #tpu.memory_space<vmem>>, vector<1x8x128xf32>
    tpu.vector_store %arg3[%c0_16, %c0_17, %c0_18], %55 {strides = array<i32>} : memref<1x8x128xf32, #tpu.memory_space<vmem>>, vector<1x8x128xf32>,
    %57 = arith.cmpf oeq, %5, %19 : vector<32x128xf32>
    %58 = arith.cmpf oeq, %11, %19 : vector<32x128xf32>
    %c1_i32_19 = arith.constant 1 : i32
    %c2_i32 = arith.constant 2 : i32
    %59 = vector.broadcast %c1_i32_19 : i32 to vector<32x128xi32>
    %60 = vector.broadcast %c2_i32 : i32 to vector<32x128xi32>
    %61 = arith.select %58, %59, %60 : vector<32x128xi1>, vector<32x128xi32>
    %c0_i32_20 = arith.constant 0 : i32
    %62 = vector.broadcast %c0_i32_20 : i32 to vector<32x128xi32>
    %63 = arith.select %57, %62, %61 : vector<32x128xi1>, vector<32x128xi32>
    %c1_i32_21 = arith.constant 1 : i32
    %64 = vector.broadcast %c1_i32_21 : i32 to vector<32x128xi32>
    %65 = arith.subi %63, %64 : vector<32x128xi32>
    %66 = arith.trunci %65 : vector<32x128xi32> to vector<32x128xi8>
    %c0_22 = arith.constant 0 : index
    %c0_23 = arith.constant 0 : index
    %67 = vector.load %arg4[%c0_22, %c0_23] : memref<32x128xi8, #tpu.memory_space<vmem>>, vector<32x128xi8>
    tpu.vector_store %arg4[%c0_22, %c0_23], %66 {strides = array<i32>} : memref<32x128xi8, #tpu.memory_space<vmem>>, vector<32x128xi8>,
    return
  }
  func.func @transform_0(%arg0: i32) -> (i32, i32, i32) {
    %c0_i32 = arith.constant 0 : i32
    %c0_i32_0 = arith.constant 0 : i32
    %c0_i32_1 = arith.constant 0 : i32
    return %c0_i32, %arg0, %c0_i32_0 : i32, i32, i32
  }
  func.func @transform_1(%arg0: i32) -> (i32, i32) {
    %c0_i32 = arith.constant 0 : i32
    %c0_i32_0 = arith.constant 0 : i32
    return %arg0, %c0_i32 : i32, i32
  }
  func.func @transform_2(%arg0: i32) -> (i32, i32, i32) {
    %c0_i32 = arith.constant 0 : i32
    %c0_i32_0 = arith.constant 0 : i32
    %c0_i32_1 = arith.constant 0 : i32
    return %arg0, %c0_i32, %c0_i32_0 : i32, i32, i32
  }
  func.func @transform_3(%arg0: i32) -> (i32, i32) {
    %c0_i32 = arith.constant 0 : i32
    %c0_i32_0 = arith.constant 0 : i32
    return %arg0, %c0_i32 : i32, i32
  }
}

</mosaic_0001>

<llo_original>
// kernel: tpu_custom_call.1
$region0: #{tpu_custom_call.1}
  #allocation0 [shape = 'u32[]', space=smem, size = 0x4, offset = 0x4, fixed_abs, tag = 'smem constant byte address 0x4 - core index']
  #allocation1 [shape = 'u32[144,128]{1,0:T(1,128)}', space=vmem, size = 0x12000, scoped, tag = 'internal scratch']
  %s0 = inlined_call_operand.hbm [shape: f32[3,32,128], index: 0, kind: input, shape index: {}]
  %s1 = inlined_call_operand.hbm [shape: s8[32,128], index: 1, kind: input, shape index: {}]
  %s2 = inlined_call_operand.hbm [shape: f32[1,8,128], index: 2, kind: output, shape index: {0}]
  %s3 = inlined_call_operand.hbm [shape: s8[32,128], index: 3, kind: output, shape index: {1}]
  %4 = xla_tuple %s2, %s3
  %s5 = sld [smem:[#allocation0]]
  $region34: #{tpu_custom_call.1} parent=0
    _
  %s7 = ssub.s32 1, %s5
  %s8 = scalar_select 0, %s7, %s5
  $region1: #{tpu_custom_call.1} parent=0
    #allocation2 [shape = 'u8[49152]{0}', space=vmem, size = 0xc000, scoped, tag = 'input window, operand 0, single buffered']
    #allocation3 [shape = 's32[1]{0}', space=sflag, size = 0x4, scoped, tag = 'scoped memory for tpu_custom_call.1']
    #allocation4 [shape = 's32[1]{0}', space=sflag, size = 0x4, scoped, tag = 'scoped memory for tpu_custom_call.1']
    #allocation5 [shape = 'u8[4096]{0}', space=vmem, size = 0x1000, scoped, tag = 'input window, operand 1, single buffered']
    #allocation6 [shape = 's32[1]{0}', space=sflag, size = 0x4, scoped, tag = 'scoped memory for tpu_custom_call.1']
    #allocation7 [shape = 'u8[4096]{0}', space=vmem, size = 0x1000, scoped, tag = 'output window, operand 0, single buffered']
    #allocation8 [shape = 'u8[4096]{0}', space=vmem, size = 0x1000, scoped, tag = 'output window, operand 1, single buffered']
    #allocation9 [shape = 's32[1]{0}', space=sflag, size = 0x4, scoped, tag = 'scoped memory for tpu_custom_call.1']
    %9 = vsyncpa [#allocation3], 0
    %10 = vsyncpa [#allocation6], 0
    %11 = vsyncpa [#allocation4], 0
    %12 = vsyncpa [#allocation9], 0
    // Predicated region
    $region2: #{tpu_custom_call.1} parent=1 // pred_check
      _
    $region3: #{tpu_custom_call.1} parent=1 // pred_check_branch
      %14 = sbr.rel (0) target = $region5
    $region4: #{tpu_custom_call.1} parent=1 // pred_region
      %s16 = ssub.s32 1536, 1536
      %17 = vsyncadd [#allocation3], %s16
      %s18 = sshll.u32 [#allocation2], 4
      %s19 = int_to_ptr.vmem [resolvable:$true] %s18
      %24 = dma.hbm_to_vmem [thread:$0]  %s0, 1536, %s19, [#allocation3], 128, 128, 8
    $region5: #{tpu_custom_call.1} parent=1 // pred_fallthru
      _
    // Predicated region
    $region6: #{tpu_custom_call.1} parent=1 // pred_check
      _
    $region7: #{tpu_custom_call.1} parent=1 // pred_check_branch
      %26 = sbr.rel (0) target = $region9
    $region8: #{tpu_custom_call.1} parent=1 // pred_region
      %s28 = ssub.s32 128, 128
      %29 = vsyncadd [#allocation6], %s28
      %s31 = sshll.u32 [#allocation5], 4
      %s32 = int_to_ptr.vmem [resolvable:$true] %s31
      %34 = dma.hbm_to_vmem [thread:$0]  %s1, 128, %s32, [#allocation6]
    $region9: #{tpu_custom_call.1} parent=1 // pred_fallthru
      _
    // Predicated region
    $region10: #{tpu_custom_call.1} parent=1 // pred_check
      _
    $region11: #{tpu_custom_call.1} parent=1 // pred_check_branch
      %36 = sbr.rel (0) target = $region13
    $region12: #{tpu_custom_call.1} parent=1 // pred_region
      %37 = dma.done [#allocation3], 1536
    $region13: #{tpu_custom_call.1} parent=1 // pred_fallthru
      _
    // Predicated region
    $region14: #{tpu_custom_call.1} parent=1 // pred_check
      _
    $region15: #{tpu_custom_call.1} parent=1 // pred_check_branch
      %39 = sbr.rel (0) target = $region17
    $region16: #{tpu_custom_call.1} parent=1 // pred_region
      %40 = dma.done [#allocation6], 128
    $region17: #{tpu_custom_call.1} parent=1 // pred_fallthru
      _
    %v41 = vld [vmem:[#allocation2] sm:$0xff]
    %v42 = vld [vmem:[#allocation2 + $0x8] sm:$0xff]
    %v43 = vld [vmem:[#allocation2 + $0x10] sm:$0xff]
    %v44 = vld [vmem:[#allocation2 + $0x18] sm:$0xff]
    %v45 = vmax.f32 %v41, -100.0
    %v46 = vmax.f32 %v42, -100.0
    %v47 = vmax.f32 %v43, -100.0
    %v48 = vmax.f32 %v44, -100.0
    %v49 = vmin.f32 %v45, 100.0
    %v50 = vmin.f32 %v46, 100.0
    %v51 = vmin.f32 %v47, 100.0
    %v52 = vmin.f32 %v48, 100.0
    %s53 = scalar_lea.vmem [#allocation2], 32
    %v54 = vld [vmem:[%s53] sm:$0xff]
    %v55 = vld [vmem:[%s53 + $0x8] sm:$0xff]
    %v56 = vld [vmem:[%s53 + $0x10] sm:$0xff]
    %v57 = vld [vmem:[%s53 + $0x18] sm:$0xff]
    %v58 = vmax.f32 %v54, -100.0
    %v59 = vmax.f32 %v55, -100.0
    %v60 = vmax.f32 %v56, -100.0
    %v61 = vmax.f32 %v57, -100.0
    %v62 = vmin.f32 %v58, 100.0
    %v63 = vmin.f32 %v59, 100.0
    %v64 = vmin.f32 %v60, 100.0
    %v65 = vmin.f32 %v61, 100.0
    %s66 = scalar_lea.vmem [#allocation2], 64
    %v67 = vld [vmem:[%s66] sm:$0xff]
    %v68 = vld [vmem:[%s66 + $0x8] sm:$0xff]
    %v69 = vld [vmem:[%s66 + $0x10] sm:$0xff]
    %v70 = vld [vmem:[%s66 + $0x18] sm:$0xff]
    %v71 = vmax.f32 %v67, -100.0
    %v72 = vmax.f32 %v68, -100.0
    %v73 = vmax.f32 %v69, -100.0
    %v74 = vmax.f32 %v70, -100.0
    %v75 = vmin.f32 %v71, 100.0
    %v76 = vmin.f32 %v72, 100.0
    %v77 = vmin.f32 %v73, 100.0
    %v78 = vmin.f32 %v74, 100.0
    %v79 = vmax.f32 %v49, %v62
    %v80 = vmax.f32 %v50, %v63
    %v81 = vmax.f32 %v51, %v64
    %v82 = vmax.f32 %v52, %v65
    %v83 = vmax.f32 %v79, %v75
    %v84 = vmax.f32 %v80, %v76
    %v85 = vmax.f32 %v81, %v77
    %v86 = vmax.f32 %v82, %v78
    %v87 = vsub.f32 %v49, %v83
    %v88 = vsub.f32 %v50, %v84
    %v89 = vsub.f32 %v51, %v85
    %v90 = vsub.f32 %v52, %v86
    %v91 = vmul.f32 %v87, 1.442695
    %v92 = vpow.pop %v91
    %v93 = vmul.f32 %v88, 1.442695
    %v94 = vpow.pop %v93
    %v95 = vmul.f32 %v89, 1.442695
    %v96 = vpow.pop %v95
    %v97 = vmul.f32 %v90, 1.442695
    %v98 = vpow.pop %v97
    %v99 = vsub.f32 %v62, %v83
    %v100 = vsub.f32 %v63, %v84
    %v101 = vsub.f32 %v64, %v85
    %v102 = vsub.f32 %v65, %v86
    %v103 = vmul.f32 %v99, 1.442695
    %v104 = vpow.pop %v103
    %v105 = vmul.f32 %v100, 1.442695
    %v106 = vpow.pop %v105
    %v107 = vmul.f32 %v101, 1.442695
    %v108 = vpow.pop %v107
    %v109 = vmul.f32 %v102, 1.442695
    %v110 = vpow.pop %v109
    %v111 = vadd.f32 %v92, %v104
    %v112 = vadd.f32 %v94, %v106
    %v113 = vadd.f32 %v96, %v108
    %v114 = vadd.f32 %v98, %v110
    %v115 = vsub.f32 %v75, %v83
    %v116 = vsub.f32 %v76, %v84
    %v117 = vsub.f32 %v77, %v85
    %v118 = vsub.f32 %v78, %v86
    %v119 = vmul.f32 %v115, 1.442695
    %v120 = vpow.pop %v119
    %v121 = vmul.f32 %v116, 1.442695
    %v122 = vpow.pop %v121
    %v123 = vmul.f32 %v117, 1.442695
    %v124 = vpow.pop %v123
    %v125 = vmul.f32 %v118, 1.442695
    %v126 = vpow.pop %v125
    %v127 = vadd.f32 %v111, %v120
    %v128 = vadd.f32 %v112, %v122
    %v129 = vadd.f32 %v113, %v124
    %v130 = vadd.f32 %v114, %v126
    %v131 = vlog2.pop %v127
    %v132 = vmul.f32 %v131, 0.6931472
    %v133 = vlog2.pop %v128
    %v134 = vmul.f32 %v133, 0.6931472
    %v135 = vlog2.pop %v129
    %v136 = vmul.f32 %v135, 0.6931472
    %v137 = vlog2.pop %v130
    %v138 = vmul.f32 %v137, 0.6931472
    %v139 = vadd.f32 %v83, %v132
    %v140 = vadd.f32 %v84, %v134
    %v141 = vadd.f32 %v85, %v136
    %v142 = vadd.f32 %v86, %v138
    %v143 = vld [vmem:[#allocation5] sm:$0xff]
    %v144 = vunpack.c.0.s8 %v143
    %v145 = vunpack.c.1.s8 %v143
    %v146 = vunpack.c.2.s8 %v143
    %v147 = vunpack.c.3.s8 %v143
    %v148 = vadd.s32 %v144, 1
    %v149 = vadd.s32 %v145, 1
    %v150 = vadd.s32 %v146, 1
    %v151 = vadd.s32 %v147, 1
    %vm152 = vcmp.eq.s32.totalorder %v148, 0
    %vm153 = vcmp.eq.s32.totalorder %v149, 0
    %vm154 = vcmp.eq.s32.totalorder %v150, 0
    %vm155 = vcmp.eq.s32.totalorder %v151, 0
    %vm156 = vcmp.eq.s32.totalorder %v148, 1
    %vm157 = vcmp.eq.s32.totalorder %v149, 1
    %vm158 = vcmp.eq.s32.totalorder %v150, 1
    %vm159 = vcmp.eq.s32.totalorder %v151, 1
    %v160 = vsel %vm156, %v62, %v75
    %v161 = vsel %vm157, %v63, %v76
    %v162 = vsel %vm158, %v64, %v77
    %v163 = vsel %vm159, %v65, %v78
    %v164 = vsel %vm152, %v49, %v160
    %v165 = vsel %vm153, %v50, %v161
    %v166 = vsel %vm154, %v51, %v162
    %v167 = vsel %vm155, %v52, %v163
    %v168 = vsub.f32 %v139, %v164
    %v169 = vsub.f32 %v140, %v165
    %v170 = vsub.f32 %v141, %v166
    %v171 = vsub.f32 %v142, %v167
    %v172 = vlaneseq
    %v173 = vshrl.u32 %v172, 7
    %v174 = vadd.s32 %v173, 8
    %v175 = vadd.s32 %v173, 16
    %v176 = vadd.s32 %v173, 24
    %v177 = vlaneseq
    %v178 = vand.u32 %v177, 127
    %s179 = smul.u32 0, 32
    %v180 = vstv %s179
    %v181 = vadd.s32 %v180, %v173
    %v182 = vadd.s32 %v180, %v174
    %v183 = vadd.s32 %v180, %v175
    %v184 = vadd.s32 %v180, %v176
    %v185 = vmul.u32 %v181, 128
    %v186 = vmul.u32 %v182, 128
    %v187 = vmul.u32 %v183, 128
    %v188 = vmul.u32 %v184, 128
    %v189 = vadd.s32 %v185, %v178
    %v190 = vadd.s32 %v186, %v178
    %v191 = vadd.s32 %v187, %v178
    %v192 = vadd.s32 %v188, %v178
    %vm193 = vcmp.lt.s32.totalorder %v189, 16
    %vm194 = vcmp.lt.s32.totalorder %v190, 16
    %vm195 = vcmp.lt.s32.totalorder %v191, 16
    %vm196 = vcmp.lt.s32.totalorder %v192, 16
    %v197 = vsel %vm193, %v168, 0.0
    %v198 = vsel %vm194, %v169, 0.0
    %v199 = vsel %vm195, %v170, 0.0
    %v200 = vsel %vm196, %v171, 0.0
    %v201 = vadd.f32 %v197, %v198
    %v202 = vadd.f32 %v201, %v199
    %v203 = vadd.f32 %v202, %v200
    %204 = vst [vmem:[#allocation7] sm:$0xff] %v203
    %vm205 = vcmp.eq.f32.partialorder %v49, %v83
    %vm206 = vcmp.eq.f32.partialorder %v50, %v84
    %vm207 = vcmp.eq.f32.partialorder %v51, %v85
    %vm208 = vcmp.eq.f32.partialorder %v52, %v86
    %vm209 = vcmp.eq.f32.partialorder %v62, %v83
    %vm210 = vcmp.eq.f32.partialorder %v63, %v84
    %vm211 = vcmp.eq.f32.partialorder %v64, %v85
    %vm212 = vcmp.eq.f32.partialorder %v65, %v86
    %v213 = vsel %vm209, 1, 2
    %v214 = vsel %vm210, 1, 2
    %v215 = vsel %vm211, 1, 2
    %v216 = vsel %vm212, 1, 2
    %v217 = vsel %vm205, 0, %v213
    %v218 = vsel %vm206, 0, %v214
    %v219 = vsel %vm207, 0, %v215
    %v220 = vsel %vm208, 0, %v216
    %v221 = vsub.s32 %v217, 1
    %v222 = vsub.s32 %v218, 1
    %v223 = vsub.s32 %v219, 1
    %v224 = vsub.s32 %v220, 1
    %v225 = vpack.c.b16 %v222, %v221
    %v226 = vpack.c.b16 %v224, %v223
    %v227 = vpack.c.b8 %v226, %v225
    %228 = vst [vmem:[#allocation8] sm:$0xff] %v227
    // Predicated region
    $region18: #{tpu_custom_call.1} parent=1 // pred_check
      _
    $region19: #{tpu_custom_call.1} parent=1 // pred_check_branch
      %230 = sbr.rel (0) target = $region21
    $region20: #{tpu_custom_call.1} parent=1 // pred_region
      %s232 = ssub.s32 128, 128
      %233 = vsyncadd [#allocation4], %s232
      %s235 = sshll.u32 [#allocation7], 4
      %s236 = int_to_ptr.vmem [resolvable:$true] %s235
      %238 = dma.vmem_to_hbm [thread:$0]  %s236, 128, %s2, [#allocation4]
    $region21: #{tpu_custom_call.1} parent=1 // pred_fallthru
      _
    // Predicated region
    $region22: #{tpu_custom_call.1} parent=1 // pred_check
      _
    $region23: #{tpu_custom_call.1} parent=1 // pred_check_branch
      %240 = sbr.rel (0) target = $region25
    $region24: #{tpu_custom_call.1} parent=1 // pred_region
      %s242 = ssub.s32 128, 128
      %243 = vsyncadd [#allocation9], %s242
      %s245 = sshll.u32 [#allocation8], 4
      %s246 = int_to_ptr.vmem [resolvable:$true] %s245
      %248 = dma.vmem_to_hbm [thread:$0]  %s246, 128, %s3, [#allocation9]
    $region25: #{tpu_custom_call.1} parent=1 // pred_fallthru
      _
    // Predicated region
    $region26: #{tpu_custom_call.1} parent=1 // pred_check
      _
    $region27: #{tpu_custom_call.1} parent=1 // pred_check_branch
      %250 = sbr.rel (0) target = $region29
    $region28: #{tpu_custom_call.1} parent=1 // pred_region
      %251 = dma.done [#allocation4], 128
    $region29: #{tpu_custom_call.1} parent=1 // pred_fallthru
      _
    // Predicated region
    $region30: #{tpu_custom_call.1} parent=1 // pred_check
      _
    $region31: #{tpu_custom_call.1} parent=1 // pred_check_branch
      %253 = sbr.rel (0) target = $region33
    $region32: #{tpu_custom_call.1} parent=1 // pred_region
      %254 = dma.done [#allocation9], 128
    $region33: #{tpu_custom_call.1} parent=1 // pred_fallthru
      _
    %255 = vsyncpa [#allocation3], 1
    %256 = vsyncpa [#allocation6], 1
    %257 = vsyncpa [#allocation4], 1
    %258 = vsyncpa [#allocation9], 1

</llo_original>
